<compile_context>
chip_gen: v5e
topology: v5e:2x2
jax: 0.10.0
libtpu: 0.0.40
codegen_flags: <defaults>
</compile_context>

<pallas_src>
import functools
import math

import jax
import jax.numpy as jnp
from jax import lax
from jax.experimental import pallas as pl
from jax.experimental.pallas import tpu as pltpu


_MASK_VALUE = -1e30  # finite "-inf": keeps max()/exp() NaN-free on padded keys


def _round_up(x, m):
    return ((x + m - 1) // m) * m


# --------------------------------------------------------------------------
# Kernel 1: fused Q/K/V projection.  One wide MXU matmul per seq tile;
# 1/sqrt(d_k) is folded into Q so the score tile never needs a scaling pass.
# --------------------------------------------------------------------------
def _qkv_projection_kernel(x_ref, w_ref, q_ref, k_ref, v_ref, *, d_out_p, scale):
    qkv = jnp.dot(x_ref[...], w_ref[...], preferred_element_type=jnp.float32)
    q_ref[...] = (qkv[:, :d_out_p] * scale).astype(q_ref.dtype)
    k_ref[...] = qkv[:, d_out_p:2 * d_out_p].astype(k_ref.dtype)
    v_ref[...] = qkv[:, 2 * d_out_p:].astype(v_ref.dtype)


# --------------------------------------------------------------------------
# Kernel 2: flash attention over precomputed (pre-scaled) Q and K/V tiles.
# Grid = (num_q "parallel", num_k "arbitrary"); VMEM scratch keeps the
# online-softmax running stats in f32.
# --------------------------------------------------------------------------
def _flash_attention_kernel(q_ref, k_ref, v_ref, o_ref, m_sc, l_sc, acc_sc, *,
                            seq_len, block_k, seq_pad, compute_dtype):
    ki = pl.program_id(1)

    @pl.when(ki == 0)
    def _init():
        m_sc[...] = jnp.full_like(m_sc, -jnp.inf)
        l_sc[...] = jnp.zeros_like(l_sc)
        acc_sc[...] = jnp.zeros_like(acc_sc)

    # scores = (Q / sqrt(d_k)) @ K^T without materializing a transpose:
    # contract the last axes of both operands.
    s = lax.dot_general(q_ref[...], k_ref[...], (((1,), (1,)), ((), ())),
                        preferred_element_type=jnp.float32)          # (bq, bk)

    if seq_pad > seq_len:
        # Mask padded kv positions so they get zero softmax mass.  Every kv
        # tile holds >= 1 real row (padding < bk), so m_new stays finite.
        kv_pos = ki * block_k + lax.broadcasted_iota(jnp.int32, s.shape, 1)
        s = jnp.where(kv_pos < seq_len, s, _MASK_VALUE)

    # Online softmax update.
    m_prev = m_sc[...]
    m_new = jnp.maximum(m_prev, jnp.max(s, axis=-1, keepdims=True))
    alpha = jnp.exp(m_prev - m_new)
    p = jnp.exp(s - m_new)
    l_sc[...] = alpha * l_sc[...] + jnp.sum(p, axis=-1, keepdims=True)
    acc_sc[...] = alpha * acc_sc[...] + jnp.dot(
        p.astype(compute_dtype), v_ref[...], preferred_element_type=jnp.float32)
    m_sc[...] = m_new

    @pl.when(ki == pl.num_programs(1) - 1)
    def _finalize():
        inv_l = pl.reciprocal(l_sc[...], approx=True)   # EUP slot; VALU stays free
        o_ref[...] = (acc_sc[...] * inv_l).astype(o_ref.dtype)


def _vmem_limit_bytes(bytes_needed):
    """Size the scoped-VMEM limit from the real tile footprint (no 32MiB clamp)."""
    try:
        info = pltpu.get_tpu_info()
        phys = int(getattr(info, "vmem_capacity_bytes", 64 * 1024 * 1024))
    except Exception:
        phys = 64 * 1024 * 1024          # conservative (v7x) fallback
    cap = phys * 3 // 4                  # ~96 MiB on v5e/v6e, ~48 MiB on v7x
    return int(min(max(2 * bytes_needed, 16 * 1024 * 1024), cap))


def self_attention_v1(x, w_query, w_key, w_value, *,
                      block_q=256, block_k=512, compute_dtype=jnp.bfloat16):
    """SelfAttention_v1 forward: softmax((xWq)(xWk)^T / sqrt(d_out)) @ (xWv)."""
    seq_len, d_in = x.shape
    d_out = w_query.shape[1]
    out_dtype = x.dtype
    cdt = jnp.dtype(compute_dtype)
    it = cdt.itemsize

    # ---- tiling ----------------------------------------------------------
    # 16-row granularity works for both f32 (8) and bf16 (16) sublane packing.
    # Cap bq at ~seq/2 so num_q >= 2 when possible (v7x megacore sharding).
    bq = max(16, min(block_q, _round_up(-(-seq_len // 2), 16)))
    # kv tile: a multiple of bq (=> padding < bk => every kv tile holds real rows).
    bk = max(bq, (min(block_k, _round_up(seq_len, bq)) // bq) * bq)
    seq_pad = _round_up(seq_len, bk)
    d_in_p = _round_up(d_in, 128)
    d_out_p = _round_up(d_out, 128)
    num_q, num_k = seq_pad // bq, seq_pad // bk

    # ---- host-side padding (jnp.pad; hoist for repeated calls) ------------
    x_p = jnp.pad(x.astype(cdt), ((0, seq_pad - seq_len), (0, d_in_p - d_in)))

    def _pad_w(w):
        return jnp.pad(w.astype(cdt), ((0, d_in_p - d_in), (0, d_out_p - d_out)))

    # Fused [Wq | Wk | Wv] -> one wide, lane-dense projection operand.
    w_qkv = jnp.concatenate([_pad_w(w_query), _pad_w(w_key), _pad_w(w_value)],
                            axis=1)                              # (d_in_p, 3*d_out_p)

    # ---- 1) fused QKV projection (one MXU pass over x) --------------------
    proj_vmem = (2 * bk * d_in_p * it               # x tile, double-buffered
                 + 2 * d_in_p * 3 * d_out_p * it    # fused weights, double-buffered
                 + 2 * 3 * bk * d_out_p * it)       # q/k/v output tiles
    # TODO(synk): at production d_in on v7x, set pipeline_mode=pl.Buffered(1) on the
    # constant-index weight BlockSpec (or tile the d_in contraction) to halve its
    # resident VMEM footprint.
    q_s, k_p, v_p = pl.pallas_call(
        functools.partial(_qkv_projection_kernel, d_out_p=d_out_p,
                          scale=1.0 / math.sqrt(d_out)),
        out_shape=tuple(jax.ShapeDtypeStruct((seq_pad, d_out_p), cdt)
                        for _ in range(3)),
        grid_spec=pltpu.PrefetchScalarGridSpec(
            num_scalar_prefetch=0,
            grid=(num_k,),
            in_specs=[
                pl.BlockSpec((bk, d_in_p), lambda i: (i, 0)),            # x rows
                pl.BlockSpec((d_in_p, 3 * d_out_p), lambda i: (0, 0)),   # fused W
            ],
            out_specs=tuple(pl.BlockSpec((bk, d_out_p), lambda i: (i, 0))
                            for _ in range(3)),
        ),
        compiler_params=pltpu.CompilerParams(
            dimension_semantics=("parallel",),
            vmem_limit_bytes=_vmem_limit_bytes(proj_vmem),
        ),
    )(x_p, w_qkv)

    # ---- 2) flash attention over precomputed Q/K/V -------------------------
    flash_vmem = (2 * bq * d_out_p * it                                 # q tile
                  + 2 * 2 * bk * d_out_p * it                           # k + v tiles
                  + 2 * bq * d_out_p * jnp.dtype(out_dtype).itemsize    # out tile
                  + bq * d_out_p * 4                                    # acc scratch
                  + 2 * bq * 128 * 4)                                   # m, l scratch
    out_p = pl.pallas_call(
        functools.partial(_flash_attention_kernel, seq_len=seq_len,
                          block_k=bk, seq_pad=seq_pad, compute_dtype=cdt),
        out_shape=jax.ShapeDtypeStruct((seq_pad, d_out_p), out_dtype),
        grid_spec=pltpu.PrefetchScalarGridSpec(
            num_scalar_prefetch=0,
            grid=(num_q, num_k),
            in_specs=[
                pl.BlockSpec((bq, d_out_p), lambda qi, ki: (qi, 0)),   # Q (pre-scaled)
                pl.BlockSpec((bk, d_out_p), lambda qi, ki: (ki, 0)),   # K
                pl.BlockSpec((bk, d_out_p), lambda qi, ki: (ki, 0)),   # V
            ],
            out_specs=pl.BlockSpec((bq, d_out_p), lambda qi, ki: (qi, 0)),
            scratch_shapes=[
                pltpu.VMEM((bq, 1), jnp.float32),         # running max
                pltpu.VMEM((bq, 1), jnp.float32),         # running sum
                pltpu.VMEM((bq, d_out_p), jnp.float32),   # output accumulator
            ],
        ),
        compiler_params=pltpu.CompilerParams(
            dimension_semantics=("parallel", "arbitrary"),
            vmem_limit_bytes=_vmem_limit_bytes(flash_vmem),
        ),
    )(q_s, k_p, v_p)

    # Slice off padded rows / lanes.
    return out_p[:seq_len, :d_out]


def _reference(x, w_query, w_key, w_value):
    q = x @ w_query
    k = x @ w_key
    v = x @ w_value
    scores = q @ k.T
    w = jax.nn.softmax(scores / (k.shape[-1] ** 0.5), axis=-1)
    return w @ v


if __name__ == "__main__":
    # --- Toy shapes straight from the PyTorch reference module (6x3, d_out=2) ---
    x = jnp.array(
        [
            [0.43, 0.15, 0.89],
            [0.55, 0.87, 0.66],
            [0.57, 0.85, 0.64],
            [0.22, 0.58, 0.33],
            [0.77, 0.25, 0.10],
            [0.05, 0.80, 0.55],
        ],
        dtype=jnp.float32,
    )
    d_in, d_out = 3, 2

    key = jax.random.PRNGKey(0)
    kq, kk, kv = jax.random.split(key, 3)
    w_query = jax.random.uniform(kq, (d_in, d_out), dtype=jnp.float32)
    w_key = jax.random.uniform(kk, (d_in, d_out), dtype=jnp.float32)
    w_value = jax.random.uniform(kv, (d_in, d_out), dtype=jnp.float32)

    ref = _reference(x, w_query, w_key, w_value)

    out = self_attention_v1(x, w_query, w_key, w_value)               # bf16 MXU default
    jax.block_until_ready(out)
    assert out.shape == (6, 2), out.shape
    assert jnp.allclose(out, ref, atol=2e-2, rtol=2e-2), (out, ref)

    out_f32 = self_attention_v1(x, w_query, w_key, w_value, compute_dtype=jnp.float32)
    jax.block_until_ready(out_f32)
    assert jnp.allclose(out_f32, ref, atol=5e-3, rtol=5e-3), (out_f32, ref)

    # --- Multi-tile checks: decoupled bq/bk, 2 q-tiles on the parallel axis ---
    S2, DI2, DO2 = 384, 64, 64
    k1, k2, k3, k4 = jax.random.split(jax.random.PRNGKey(0), 4)
    x2 = jax.random.normal(k1, (S2, DI2), dtype=jnp.float32)
    wq2 = jax.random.normal(k2, (DI2, DO2), dtype=jnp.float32) * 0.1
    wk2 = jax.random.normal(k3, (DI2, DO2), dtype=jnp.float32) * 0.1
    wv2 = jax.random.normal(k4, (DI2, DO2), dtype=jnp.float32) * 0.1
    ref2 = _reference(x2, wq2, wk2, wv2)

    out2_f32 = self_attention_v1(x2, wq2, wk2, wv2, compute_dtype=jnp.float32)
    jax.block_until_ready(out2_f32)
    assert jnp.allclose(out2_f32, ref2, atol=5e-3, rtol=5e-3)

    out2_bf16 = self_attention_v1(x2, wq2, wk2, wv2)                  # bf16 fast path
    jax.block_until_ready(out2_bf16)
    assert jnp.allclose(out2_bf16, ref2, atol=2e-2, rtol=2e-2)

    # Smaller tiles: exercises multiple kv steps of the online softmax plus a
    # partially padded final kv tile (seq_pad 512 > 384).
    out2_small = self_attention_v1(x2, wq2, wk2, wv2, block_q=128, block_k=256,
                                   compute_dtype=jnp.float32)
    jax.block_until_ready(out2_small)
    assert jnp.allclose(out2_small, ref2, atol=5e-3, rtol=5e-3)

    print("KERNEL_OK")
</pallas_src>

<mosaic_0001>
module attributes {stable_mosaic.version = 11 : i64} {
  func.func @_qkv_projection_kernel(%arg0: i32, %arg1: memref<16x128xbf16, #tpu.memory_space<vmem>>, %arg2: memref<128x384xbf16, #tpu.memory_space<vmem>>, %arg3: memref<16x128xbf16, #tpu.memory_space<vmem>>, %arg4: memref<16x128xbf16, #tpu.memory_space<vmem>>, %arg5: memref<16x128xbf16, #tpu.memory_space<vmem>>) attributes {dimension_semantics = [#tpu.dimension_semantics<parallel>], iteration_bounds = array<i64: 1>, scalar_prefetch = 0 : i64, scratch_operands = 0 : i64, tpu.core_type = #tpu.core_type<tc>, window_params = [{transform_indices = @transform_0, window_bounds = array<i64: 16, 128>}, {pipeline_mode = #tpu.pipeline_mode<synchronous>, transform_indices = @transform_1, window_bounds = array<i64: 128, 384>}, {transform_indices = @transform_2, window_bounds = array<i64: 16, 128>}, {transform_indices = @transform_3, window_bounds = array<i64: 16, 128>}, {transform_indices = @transform_4, window_bounds = array<i64: 16, 128>}]} {
    %c0 = arith.constant 0 : index
    %c0_0 = arith.constant 0 : index
    %0 = vector.load %arg1[%c0, %c0_0] : memref<16x128xbf16, #tpu.memory_space<vmem>>, vector<16x128xbf16>
    %c0_1 = arith.constant 0 : index
    %c0_2 = arith.constant 0 : index
    %1 = vector.load %arg2[%c0_1, %c0_2] : memref<128x384xbf16, #tpu.memory_space<vmem>>, vector<128x384xbf16>
    %cst = arith.constant dense<0.000000e+00> : vector<16x384xf32>
    %2 = tpu.matmul %0, %1, %cst {dimension_numbers = #tpu.dot_dimension_numbers<[1], [0], [0], [1], [0, 0, 1, 1], [], []>} : vector<16x128xbf16>, vector<128x384xbf16>, vector<16x384xf32> -> vector<16x384xf32>
    %3 = vector.extract_strided_slice %2 {offsets = [0, 0], sizes = [16, 128], strides = [1, 1]} : vector<16x384xf32> to vector<16x128xf32>
    %cst_3 = arith.constant 0.707106769 : f32
    %4 = vector.broadcast %cst_3 : f32 to vector<16x128xf32>
    %5 = arith.mulf %3, %4 : vector<16x128xf32>
    %6 = arith.truncf %5 : vector<16x128xf32> to vector<16x128xbf16>
    %c0_4 = arith.constant 0 : index
    %c0_5 = arith.constant 0 : index
    %7 = vector.load %arg3[%c0_4, %c0_5] : memref<16x128xbf16, #tpu.memory_space<vmem>>, vector<16x128xbf16>
    tpu.vector_store %arg3[%c0_4, %c0_5], %6 {strides = array<i32>} : memref<16x128xbf16, #tpu.memory_space<vmem>>, vector<16x128xbf16>,
    %8 = vector.extract_strided_slice %2 {offsets = [0, 128], sizes = [16, 128], strides = [1, 1]} : vector<16x384xf32> to vector<16x128xf32>
    %9 = arith.truncf %8 : vector<16x128xf32> to vector<16x128xbf16>
    %c0_6 = arith.constant 0 : index
    %c0_7 = arith.constant 0 : index
    %10 = vector.load %arg4[%c0_6, %c0_7] : memref<16x128xbf16, #tpu.memory_space<vmem>>, vector<16x128xbf16>
    tpu.vector_store %arg4[%c0_6, %c0_7], %9 {strides = array<i32>} : memref<16x128xbf16, #tpu.memory_space<vmem>>, vector<16x128xbf16>,
    %11 = vector.extract_strided_slice %2 {offsets = [0, 256], sizes = [16, 128], strides = [1, 1]} : vector<16x384xf32> to vector<16x128xf32>
    %12 = arith.truncf %11 : vector<16x128xf32> to vector<16x128xbf16>
    %c0_8 = arith.constant 0 : index
    %c0_9 = arith.constant 0 : index
    %13 = vector.load %arg5[%c0_8, %c0_9] : memref<16x128xbf16, #tpu.memory_space<vmem>>, vector<16x128xbf16>
    tpu.vector_store %arg5[%c0_8, %c0_9], %12 {strides = array<i32>} : memref<16x128xbf16, #tpu.memory_space<vmem>>, vector<16x128xbf16>,
    return
  }
  func.func @transform_0(%arg0: i32) -> (i32, i32) {
    %c0_i32 = arith.constant 0 : i32
    %c0_i32_0 = arith.constant 0 : i32
    return %arg0, %c0_i32 : i32, i32
  }
  func.func @transform_1(%arg0: i32) -> (i32, i32) {
    %c0_i32 = arith.constant 0 : i32
    %c0_i32_0 = arith.constant 0 : i32
    %c0_i32_1 = arith.constant 0 : i32
    return %c0_i32, %c0_i32_0 : i32, i32
  }
  func.func @transform_2(%arg0: i32) -> (i32, i32) {
    %c0_i32 = arith.constant 0 : i32
    %c0_i32_0 = arith.constant 0 : i32
    return %arg0, %c0_i32 : i32, i32
  }
  func.func @transform_3(%arg0: i32) -> (i32, i32) {
    %c0_i32 = arith.constant 0 : i32
    %c0_i32_0 = arith.constant 0 : i32
    return %arg0, %c0_i32 : i32, i32
  }
  func.func @transform_4(%arg0: i32) -> (i32, i32) {
    %c0_i32 = arith.constant 0 : i32
    %c0_i32_0 = arith.constant 0 : i32
    return %arg0, %c0_i32 : i32, i32
  }
}

</mosaic_0001>

<llo_original>
// kernel: tpu_custom_call.1
$region0: #{tpu_custom_call.1}
  #allocation0 [shape = 'u32[]', space=smem, size = 0x4, offset = 0x4, fixed_abs, tag = 'smem constant byte address 0x4 - core index']
  #allocation1 [shape = 'u32[72,128]{1,0:T(1,128)}', space=vmem, size = 0x9000, scoped, tag = 'internal scratch']
  %s0 = inlined_call_operand.hbm [shape: bf16[16,128], index: 0, kind: input, shape index: {}]
  %s1 = inlined_call_operand.hbm [shape: bf16[128,384], index: 1, kind: input, shape index: {}]
  %s2 = inlined_call_operand.hbm [shape: bf16[16,128], index: 2, kind: output, shape index: {0}]
  %s3 = inlined_call_operand.hbm [shape: bf16[16,128], index: 3, kind: output, shape index: {1}]
  %s4 = inlined_call_operand.hbm [shape: bf16[16,128], index: 4, kind: output, shape index: {2}]
  %5 = xla_tuple %s2, %s3, %s4
  %s6 = sld [smem:[#allocation0]]
  $region42: #{tpu_custom_call.1} parent=0
    _
  %s8 = ssub.s32 1, %s6
  %s9 = scalar_select 0, %s8, %s6
  $region1: #{tpu_custom_call.1} parent=0
    #allocation2 [shape = 'u8[4096]{0}', space=vmem, size = 0x1000, scoped, tag = 'input window, operand 0, single buffered']
    #allocation3 [shape = 's32[1]{0}', space=sflag, size = 0x4, scoped, tag = 'scoped memory for tpu_custom_call.1']
    #allocation4 [shape = 's32[1]{0}', space=sflag, size = 0x4, scoped, tag = 'scoped memory for tpu_custom_call.1']
    #allocation5 [shape = 'u8[98304]{0}', space=vmem, size = 0x18000, scoped, tag = 'input window, operand 1, single buffered']
    #allocation6 [shape = 's32[1]{0}', space=sflag, size = 0x4, scoped, tag = 'scoped memory for tpu_custom_call.1']
    #allocation7 [shape = 'u8[4096]{0}', space=vmem, size = 0x1000, scoped, tag = 'output window, operand 0, single buffered']
    #allocation8 [shape = 'u8[4096]{0}', space=vmem, size = 0x1000, scoped, tag = 'output window, operand 1, single buffered']
    #allocation9 [shape = 's32[1]{0}', space=sflag, size = 0x4, scoped, tag = 'scoped memory for tpu_custom_call.1']
    #allocation10 [shape = 'u8[4096]{0}', space=vmem, size = 0x1000, scoped, tag = 'output window, operand 2, single buffered']
    %10 = vsyncpa [#allocation3], 0
    %11 = vsyncpa [#allocation6], 0
    %12 = vsyncpa [#allocation4], 0
    %13 = vsyncpa [#allocation9], 0
    // Predicated region
    $region2: #{tpu_custom_call.1} parent=1 // pred_check
      _
    $region3: #{tpu_custom_call.1} parent=1 // pred_check_branch
      %15 = sbr.rel (0) target = $region5
    $region4: #{tpu_custom_call.1} parent=1 // pred_region
      %17 = vsyncadd [#allocation3], 0
      %s18 = sshll.u32 %s0, 4
      %s19 = int_to_ptr.hbm [resolvable:$true] %s18
      %s20 = sshll.u32 [#allocation2], 4
      %s21 = int_to_ptr.vmem [resolvable:$true] %s20
      %26 = dma.hbm_to_vmem [thread:$0]  %s19, 128, %s21, [#allocation3], 64, 64, 4
    $region5: #{tpu_custom_call.1} parent=1 // pred_fallthru
      _
    // Predicated region
    $region6: #{tpu_custom_call.1} parent=1 // pred_check
      _
    $region7: #{tpu_custom_call.1} parent=1 // pred_check_branch
      %28 = sbr.rel (0) target = $region9
    $region8: #{tpu_custom_call.1} parent=1 // pred_region
      %30 = vsyncadd [#allocation6], 0
      %s31 = sshll.u32 %s1, 4
      %s32 = int_to_ptr.hbm [resolvable:$true] %s31
      %s33 = sshll.u32 [#allocation5], 4
      %s34 = int_to_ptr.vmem [resolvable:$true] %s33
      %39 = dma.hbm_to_vmem [thread:$0]  %s32, 3072, %s34, [#allocation6], 192, 192, 12
    $region9: #{tpu_custom_call.1} parent=1 // pred_fallthru
      _
    // Predicated region
    $region10: #{tpu_custom_call.1} parent=1 // pred_check
      _
    $region11: #{tpu_custom_call.1} parent=1 // pred_check_branch
      %41 = sbr.rel (0) target = $region13
    $region12: #{tpu_custom_call.1} parent=1 // pred_region
      %43 = dma.done [#allocation3], 128
    $region13: #{tpu_custom_call.1} parent=1 // pred_fallthru
      _
    // Predicated region
    $region14: #{tpu_custom_call.1} parent=1 // pred_check
      _
    $region15: #{tpu_custom_call.1} parent=1 // pred_check_branch
      %45 = sbr.rel (0) target = $region17
    $region16: #{tpu_custom_call.1} parent=1 // pred_region
      %47 = dma.done [#allocation6], 3072
    $region17: #{tpu_custom_call.1} parent=1 // pred_fallthru
      _
    %v48 = vld [vmem:[#allocation2] sm:$0xf]
    %v49 = vld [vmem:[#allocation2 + $0x4] sm:$0xf]
    %v50 = vld [vmem:[#allocation5] sm:$0xff]
    %v51 = vld [vmem:[#allocation5 + $0x8] sm:$0xf]
    %v52 = vld [vmem:[#allocation5 + $0xc] sm:$0xff]
    %v53 = vld [vmem:[#allocation5 + $0x14] sm:$0xf]
    %v54 = vld [vmem:[#allocation5 + $0x18] sm:$0xff]
    %v55 = vld [vmem:[#allocation5 + $0x20] sm:$0xf]
    %v56 = vld [vmem:[#allocation5 + $0x24] sm:$0xff]
    %v57 = vld [vmem:[#allocation5 + $0x2c] sm:$0xf]
    %v58 = vld [vmem:[#allocation5 + $0x30] sm:$0xff]
    %v59 = vld [vmem:[#allocation5 + $0x38] sm:$0xf]
    %v60 = vld [vmem:[#allocation5 + $0x3c] sm:$0xff]
    %v61 = vld [vmem:[#allocation5 + $0x44] sm:$0xf]
    %v62 = vld [vmem:[#allocation5 + $0x48] sm:$0xff]
    %v63 = vld [vmem:[#allocation5 + $0x50] sm:$0xf]
    %v64 = vld [vmem:[#allocation5 + $0x54] sm:$0xff]
    %v65 = vld [vmem:[#allocation5 + $0x5c] sm:$0xf]
    %v66 = vld [vmem:[#allocation5 + $0x60] sm:$0xff]
    %v67 = vld [vmem:[#allocation5 + $0x68] sm:$0xf]
    %v68 = vld [vmem:[#allocation5 + $0x6c] sm:$0xff]
    %v69 = vld [vmem:[#allocation5 + $0x74] sm:$0xf]
    %v70 = vld [vmem:[#allocation5 + $0x78] sm:$0xff]
    %v71 = vld [vmem:[#allocation5 + $0x80] sm:$0xf]
    %v72 = vld [vmem:[#allocation5 + $0x84] sm:$0xff]
    %v73 = vld [vmem:[#allocation5 + $0x8c] sm:$0xf]
    %v74 = vld [vmem:[#allocation5 + $0x90] sm:$0xff]
    %v75 = vld [vmem:[#allocation5 + $0x98] sm:$0xf]
    %v76 = vld [vmem:[#allocation5 + $0x9c] sm:$0xff]
    %v77 = vld [vmem:[#allocation5 + $0xa4] sm:$0xf]
    %v78 = vld [vmem:[#allocation5 + $0xa8] sm:$0xff]
    %v79 = vld [vmem:[#allocation5 + $0xb0] sm:$0xf]
    %v80 = vld [vmem:[#allocation5 + $0xb4] sm:$0xff]
    %v81 = vld [vmem:[#allocation5 + $0xbc] sm:$0xf]
    %v84 = vunpack.c.l.b16 %v48
    %v85 = vunpack.c.l.b16 %v49
    %v86 = vpack.c.b16 %v85, %v84
    %v120 = vunpack.c.l.b16 %v50
    %v121 = vunpack.c.h.b16 %v50
    %v122 = vunpack.c.l.b16 %v51
    %v123 = vunpack.c.l.b16 %v52
    %v124 = vunpack.c.h.b16 %v52
    %v125 = vunpack.c.l.b16 %v53
    %v126 = vunpack.c.l.b16 %v54
    %v127 = vunpack.c.h.b16 %v54
    %v128 = vunpack.c.l.b16 %v55
    %v129 = vunpack.c.l.b16 %v56
    %v130 = vunpack.c.h.b16 %v56
    %v131 = vunpack.c.l.b16 %v57
    %v132 = vunpack.c.l.b16 %v58
    %v133 = vunpack.c.h.b16 %v58
    %v134 = vunpack.c.l.b16 %v59
    %v135 = vunpack.c.l.b16 %v60
    %v136 = vunpack.c.h.b16 %v60
    %v137 = vunpack.c.l.b16 %v61
    %v138 = vunpack.c.l.b16 %v62
    %v139 = vunpack.c.h.b16 %v62
    %v140 = vunpack.c.l.b16 %v63
    %v141 = vunpack.c.l.b16 %v64
    %v142 = vunpack.c.h.b16 %v64
    %v143 = vunpack.c.l.b16 %v65
    %v144 = vunpack.c.l.b16 %v66
    %v145 = vunpack.c.h.b16 %v66
    %v146 = vunpack.c.l.b16 %v67
    %v147 = vunpack.c.l.b16 %v68
    %v148 = vunpack.c.h.b16 %v68
    %v149 = vunpack.c.l.b16 %v69
    %v150 = vunpack.c.l.b16 %v70
    %v151 = vunpack.c.h.b16 %v70
    %v152 = vunpack.c.l.b16 %v71
    %v153 = vunpack.c.l.b16 %v72
    %v154 = vunpack.c.h.b16 %v72
    %v155 = vunpack.c.l.b16 %v73
    %v156 = vunpack.c.l.b16 %v74
    %v157 = vunpack.c.h.b16 %v74
    %v158 = vunpack.c.l.b16 %v75
    %v159 = vunpack.c.l.b16 %v76
    %v160 = vunpack.c.h.b16 %v76
    %v161 = vunpack.c.l.b16 %v77
    %v162 = vunpack.c.l.b16 %v78
    %v163 = vunpack.c.h.b16 %v78
    %v164 = vunpack.c.l.b16 %v79
    %v165 = vunpack.c.l.b16 %v80
    %v166 = vunpack.c.h.b16 %v80
    %v167 = vunpack.c.l.b16 %v81
    %v168 = vpack.c.b16 %v123, %v120
    %v169 = vpack.c.b16 %v124, %v121
    %v170 = vpack.c.b16 %v125, %v122
    %v171 = vpack.c.b16 %v129, %v126
    %v172 = vpack.c.b16 %v130, %v127
    %v173 = vpack.c.b16 %v131, %v128
    %v174 = vpack.c.b16 %v135, %v132
    %v175 = vpack.c.b16 %v136, %v133
    %v176 = vpack.c.b16 %v137, %v134
    %v177 = vpack.c.b16 %v141, %v138
    %v178 = vpack.c.b16 %v142, %v139
    %v179 = vpack.c.b16 %v143, %v140
    %v180 = vpack.c.b16 %v147, %v144
    %v181 = vpack.c.b16 %v148, %v145
    %v182 = vpack.c.b16 %v149, %v146
    %v183 = vpack.c.b16 %v153, %v150
    %v184 = vpack.c.b16 %v154, %v151
    %v185 = vpack.c.b16 %v155, %v152
    %v186 = vpack.c.b16 %v159, %v156
    %v187 = vpack.c.b16 %v160, %v157
    %v188 = vpack.c.b16 %v161, %v158
    %v189 = vpack.c.b16 %v165, %v162
    %v190 = vpack.c.b16 %v166, %v163
    %v191 = vpack.c.b16 %v167, %v164
    %216 = vmatpush.bf16.msra.mxu0 %v189
    %217 = vmatpush.bf16.msra.mxu0 %v186
    %218 = vmatpush.bf16.msra.mxu0 %v183
    %219 = vmatpush.bf16.msra.mxu0 %v180
    %220 = vmatpush.bf16.msra.mxu0 %v177
    %221 = vmatpush.bf16.msra.mxu0 %v174
    %222 = vmatpush.bf16.msra.mxu0 %v171
    %223 = vmatpush.bf16.msra.mxu0 %v168
    %224 = vmatmul.bf16.gmra.mxu0 %v86
    %v225 = vpop.f32.mrf.mxu0
    %v226 = vadd.f32 0.0, %v225
    %v227 = vpop.f32.mrf.mxu0
    %v228 = vadd.f32 0.0, %v227
    %229 = vdwg.mxu0
    %230 = vmatpush.bf16.msra.mxu0 %v190
    %231 = vmatpush.bf16.msra.mxu0 %v187
    %232 = vmatpush.bf16.msra.mxu0 %v184
    %233 = vmatpush.bf16.msra.mxu0 %v181
    %234 = vmatpush.bf16.msra.mxu0 %v178
    %235 = vmatpush.bf16.msra.mxu0 %v175
    %236 = vmatpush.bf16.msra.mxu0 %v172
    %237 = vmatpush.bf16.msra.mxu0 %v169
    %238 = vmatmul.bf16.gmra.mxu0 %v86
    %v239 = vpop.f32.mrf.mxu0
    %v240 = vadd.f32 0.0, %v239
    %v241 = vpop.f32.mrf.mxu0
    %v242 = vadd.f32 0.0, %v241
    %243 = vdwg.mxu0
    %244 = vmatpush.bf16.msra.mxu0 %v191
    %245 = vmatpush.bf16.msra.mxu0 %v188
    %246 = vmatpush.bf16.msra.mxu0 %v185
    %247 = vmatpush.bf16.msra.mxu0 %v182
    %248 = vmatpush.bf16.msra.mxu0 %v179
    %249 = vmatpush.bf16.msra.mxu0 %v176
    %250 = vmatpush.bf16.msra.mxu0 %v173
    %251 = vmatpush.bf16.msra.mxu0 %v170
    %252 = vmatmul.bf16.gmra.mxu0 %v86
    %v253 = vpop.f32.mrf.mxu0
    %v254 = vadd.f32 0.0, %v253
    %v255 = vpop.f32.mrf.mxu0
    %v256 = vadd.f32 0.0, %v255
    %257 = vdwg.mxu0
    %v258 = vmul.f32 %v226, 0.70710677
    %v259 = vmul.f32 %v228, 0.70710677
    %v260 = vpack.c.bf16 %v258, %v258
    %v261 = vpack.c.bf16 %v259, %v259
    %262 = vst [vmem:[#allocation7] sm:$0xf] %v260
    %263 = vst [vmem:[#allocation7 + $0x4] sm:$0xf] %v261
    %v264 = vpack.c.bf16 %v240, %v240
    %v265 = vpack.c.bf16 %v242, %v242
    %266 = vst [vmem:[#allocation8] sm:$0xf] %v264
    %267 = vst [vmem:[#allocation8 + $0x4] sm:$0xf] %v265
    %v268 = vpack.c.bf16 %v254, %v254
    %v269 = vpack.c.bf16 %v256, %v256
    %270 = vst [vmem:[#allocation10] sm:$0xf] %v268
    %271 = vst [vmem:[#allocation10 + $0x4] sm:$0xf] %v269
    // Predicated region
    $region18: #{tpu_custom_call.1} parent=1 // pred_check
      _
    $region19: #{tpu_custom_call.1} parent=1 // pred_check_branch
      %273 = sbr.rel (0) target = $region21
    $region20: #{tpu_custom_call.1} parent=1 // pred_region
      %275 = vsyncadd [#allocation4], 0
      %s276 = sshll.u32 [#allocation7], 4
      %s277 = int_to_ptr.vmem [resolvable:$true] %s276
      %s278 = sshll.u32 %s2, 4
      %s279 = int_to_ptr.hbm [resolvable:$true] %s278
      %284 = dma.vmem_to_hbm [thread:$0]  %s277, 128, %s279, [#allocation4], 64, 64, 4
    $region21: #{tpu_custom_call.1} parent=1 // pred_fallthru
      _
    // Predicated region
    $region22: #{tpu_custom_call.1} parent=1 // pred_check
      _
    $region23: #{tpu_custom_call.1} parent=1 // pred_check_branch
      %286 = sbr.rel (0) target = $region25
    $region24: #{tpu_custom_call.1} parent=1 // pred_region
      %288 = vsyncadd [#allocation9], 0
      %s289 = sshll.u32 [#allocation8], 4
      %s290 = int_to_ptr.vmem [resolvable:$true] %s289
      %s291 = sshll.u32 %s3, 4
      %s292 = int_to_ptr.hbm [resolvable:$true] %s291
      %297 = dma.vmem_to_hbm [thread:$0]  %s290, 128, %s292, [#allocation9], 64, 64, 4
    $region25: #{tpu_custom_call.1} parent=1 // pred_fallthru
      _
    // Predicated region
    $region26: #{tpu_custom_call.1} parent=1 // pred_check
      _
    $region27: #{tpu_custom_call.1} parent=1 // pred_check_branch
      %299 = sbr.rel (0) target = $region29
    $region28: #{tpu_custom_call.1} parent=1 // pred_region
      %301 = vsyncadd [#allocation9], 0
      %s302 = sshll.u32 [#allocation10], 4
      %s303 = int_to_ptr.vmem [resolvable:$true] %s302
      %s304 = sshll.u32 %s4, 4
      %s305 = int_to_ptr.hbm [resolvable:$true] %s304
      %310 = dma.vmem_to_hbm [thread:$0]  %s303, 128, %s305, [#allocation9], 64, 64, 4
    $region29: #{tpu_custom_call.1} parent=1 // pred_fallthru
      _
    // Predicated region
    $region30: #{tpu_custom_call.1} parent=1 // pred_check
      _
    $region31: #{tpu_custom_call.1} parent=1 // pred_check_branch
      %312 = sbr.rel (0) target = $region33
    $region32: #{tpu_custom_call.1} parent=1 // pred_region
      %314 = dma.done [#allocation4], 128
    $region33: #{tpu_custom_call.1} parent=1 // pred_fallthru
      _
    // Predicated region
    $region34: #{tpu_custom_call.1} parent=1 // pred_check
      _
    $region35: #{tpu_custom_call.1} parent=1 // pred_check_branch
      %316 = sbr.rel (0) target = $region37
    $region36: #{tpu_custom_call.1} parent=1 // pred_region
      %318 = dma.done [#allocation9], 128
    $region37: #{tpu_custom_call.1} parent=1 // pred_fallthru
      _
    // Predicated region
    $region38: #{tpu_custom_call.1} parent=1 // pred_check
      _
    $region39: #{tpu_custom_call.1} parent=1 // pred_check_branch
      %320 = sbr.rel (0) target = $region41
    $region40: #{tpu_custom_call.1} parent=1 // pred_region
      %322 = dma.done [#allocation9], 128
    $region41: #{tpu_custom_call.1} parent=1 // pred_fallthru
      _
    %323 = vsyncpa [#allocation3], 1
    %324 = vsyncpa [#allocation6], 1
    %325 = vsyncpa [#allocation4], 1
    %326 = vsyncpa [#allocation9], 1

</llo_original>
